<compile_context>
chip_gen: v7x
topology: tpu7x:2x2x1
jax: 0.10.0
libtpu: 0.0.40
codegen_flags: <defaults>
</compile_context>

<pallas_src>
import jax
import jax.numpy as jnp
import numpy as np
from jax.experimental import pallas as pl
from jax.experimental.pallas import tpu as pltpu

HIDDEN = 8
NUM_EXPERTS = 4
BATCH = 2
SEQ = 8
MOE_W = NUM_EXPERTS + NUM_EXPERTS * HIDDEN          # gate cols + fused expert cols


def _moe_layer(h, w_fused, b_fused, num_experts, hdim):
    """Top-1 MoE with fused gate+expert matmul.

    h:(T,H)  w_fused:(H, E + E*H)  b_fused:(1, E + E*H) (zeros in gate cols).
    Returns (T,H).
    """
    fused = jnp.dot(h, w_fused, preferred_element_type=jnp.float32) + b_fused   # (T, E+E*H)
    logits = fused[:, :num_experts]                                             # (T, E)

    t = h.shape[0]
    e_iota = jax.lax.broadcasted_iota(jnp.int32, (t, num_experts), 1)
    m = jnp.max(logits, axis=-1, keepdims=True)                                 # (T,1)
    cand = jnp.where(logits >= m, e_iota, num_experts)                          # first-argmax
    top1 = jnp.min(cand, axis=-1, keepdims=True)                                # (T,1)
    mask = (e_iota == top1).astype(jnp.float32)                                 # (T,E) one-hot

    # softmax(logits)[top1] == exp(0) / sum(exp(logits - max)) since top1 hits max
    denom = jnp.sum(jnp.exp(logits - m), axis=-1, keepdims=True)                # (T,1)
    gate_val = pl.reciprocal(denom, approx=True)                                # (T,1)

    out = jnp.zeros_like(h)
    for ex in range(num_experts):
        lo = num_experts + ex * hdim
        oe = fused[:, lo:lo + hdim]                                             # (T,H)
        out = out + mask[:, ex:ex + 1] * oe
    return gate_val * out


def moe_model_kernel(x_ref, w_ref, b_ref, y_ref, loss_ref):
    H, E, S, B = HIDDEN, NUM_EXPERTS, SEQ, BATCH

    x = x_ref[...]                                                              # (T,H)
    w_all = w_ref[...]                                                          # (H, H + 2*MOE_W)
    b_all = b_ref[...]                                                          # (1, H + 2*MOE_W)

    # --- linear1 ---
    h = jnp.dot(x, w_all[:, :H], preferred_element_type=jnp.float32) + b_all[:, :H]

    # --- MoE layers (fused gate+expert matmul each) ---
    o2 = _moe_layer(h, w_all[:, H:H + MOE_W], b_all[:, H:H + MOE_W], E, H)
    o3 = _moe_layer(o2, w_all[:, H + MOE_W:H + 2 * MOE_W],
                    b_all[:, H + MOE_W:H + 2 * MOE_W], E, H)

    hid = h + o3                                                                # residual add

    # --- per-example seq-mean + cross-entropy, accumulated over the batch ---
    col = jax.lax.broadcasted_iota(jnp.int32, (1, H), 1)
    total = jnp.zeros((1, 1), jnp.float32)
    for b in range(B):
        sb = jnp.sum(hid[b * S:(b + 1) * S, :], axis=0, keepdims=True) * (1.0 / S)  # (1,H)
        mx = jnp.max(sb, axis=-1, keepdims=True)
        lse = mx + jnp.log(jnp.sum(jnp.exp(sb - mx), axis=-1, keepdims=True))
        tgt = jnp.sum(jnp.where(col == y_ref[b], sb, 0.0), axis=-1, keepdims=True)
        total = total + (lse - tgt)
    loss_ref[...] = total * (1.0 / B)


@jax.jit
def moe_model_loss(x, y, w_slab, b_slab):
    b, s, hdim = x.shape
    x2 = x.reshape(b * s, hdim).astype(jnp.float32)

    vmem = pl.BlockSpec(memory_space=pltpu.MemorySpace.VMEM)
    smem = pl.BlockSpec(memory_space=pltpu.MemorySpace.SMEM)
    loss = pl.pallas_call(
        moe_model_kernel,
        out_shape=jax.ShapeDtypeStruct((1, 1), jnp.float32),
        in_specs=[vmem, vmem, vmem, smem],
        out_specs=vmem,
    )(x2, w_slab, b_slab, y.astype(jnp.int32))
    return loss[0, 0]


def pack_params(p):
    """One-time (init) packing: all weights into one (H, H+2*MOE_W) slab and all
    biases into one (1, H+2*MOE_W) row, pre-transposed for right-multiplication."""
    hdim = p["w1"].shape[0]
    e = p["g2"].shape[0]

    def fuse(g, ew, eb):
        gt = g.T                                                        # (H,E)
        ewt_flat = jnp.transpose(ew, (2, 0, 1)).reshape(hdim, e * hdim)  # (H, E*H); block e = ew[e].T
        w = jnp.concatenate([gt, ewt_flat], axis=1)                     # (H, E+E*H)
        b = jnp.concatenate([jnp.zeros((e,), jnp.float32), eb.reshape(-1)]).reshape(1, -1)
        return w, b

    w2, b2 = fuse(p["g2"], p["e2w"], p["e2b"])
    w3, b3 = fuse(p["g3"], p["e3w"], p["e3b"])
    w_slab = jnp.concatenate([p["w1"].T, w2, w3], axis=1)               # (H, H + 2*(E+E*H))
    b_slab = jnp.concatenate([p["b1"].reshape(1, -1), b2, b3], axis=1)  # (1, H + 2*(E+E*H))
    return w_slab, b_slab


def reference_loss(x, y, p):
    """Pure-JAX reference with identical semantics (for correctness check)."""
    h = x @ p["w1"].T + p["b1"]

    def moe(hh, gw, ew, eb):
        gates = jax.nn.softmax(hh @ gw.T, axis=-1)
        idx = jnp.argmax(gates, axis=-1)
        mask = jax.nn.one_hot(idx, gw.shape[0], dtype=jnp.float32)
        gval = jnp.sum(gates * mask, axis=-1, keepdims=True)
        eo = jnp.einsum("bsh,eoh->bseo", hh, ew) + eb                   # (B,S,E,H)
        out = jnp.sum(mask[..., None] * eo, axis=2)
        return gval * out

    o2 = moe(h, p["g2"], p["e2w"], p["e2b"])
    o3 = moe(o2, p["g3"], p["e3w"], p["e3b"])
    hid = h + o3
    sent = hid.mean(axis=1)                                             # (B,H)
    lse = jax.scipy.special.logsumexp(sent, axis=-1)
    tgt = jnp.take_along_axis(sent, y[:, None], axis=-1)[:, 0]
    return jnp.mean(lse - tgt)


def init_params(key, hdim, num_experts):
    ks = jax.random.split(key, 10)
    bound = 1.0 / np.sqrt(hdim)

    def u(k, shape):
        return jax.random.uniform(k, shape, jnp.float32, -bound, bound)

    return {
        "w1": u(ks[0], (hdim, hdim)),
        "b1": u(ks[1], (hdim,)),
        "g2": u(ks[2], (num_experts, hdim)),           # gate Linear(H, E, bias=False)
        "e2w": u(ks[3], (num_experts, hdim, hdim)),    # per-expert Linear weights
        "e2b": u(ks[4], (num_experts, hdim)),
        "g3": u(ks[5], (num_experts, hdim)),
        "e3w": u(ks[6], (num_experts, hdim, hdim)),
        "e3b": u(ks[7], (num_experts, hdim)),
    }


if __name__ == "__main__":
    key = jax.random.PRNGKey(0)
    kx, ky, kp = jax.random.split(key, 3)

    x = jax.random.normal(kx, (BATCH, SEQ, HIDDEN), dtype=jnp.float32)
    y = jax.random.randint(ky, (BATCH,), 0, HIDDEN, dtype=jnp.int32)
    params = init_params(kp, HIDDEN, NUM_EXPERTS)

    # one-time packing outside the jitted per-call path
    w_slab, b_slab = pack_params(params)
    w_slab = jax.block_until_ready(w_slab)
    b_slab = jax.block_until_ready(b_slab)

    loss = moe_model_loss(x, y, w_slab, b_slab)
    jax.block_until_ready(loss)

    ref = reference_loss(x, y, params)
    np.testing.assert_allclose(np.asarray(loss), np.asarray(ref), rtol=2e-3, atol=2e-3)

    print("KERNEL_OK")
</pallas_src>

<mosaic_0001>
module attributes {stable_mosaic.version = 11 : i64} {
  func.func @moe_model_kernel(%arg0: memref<16x8xf32, #tpu.memory_space<vmem>>, %arg1: memref<8x80xf32, #tpu.memory_space<vmem>>, %arg2: memref<1x80xf32, #tpu.memory_space<vmem>>, %arg3: memref<2xi32, #tpu.memory_space<smem>>, %arg4: memref<1x1xf32, #tpu.memory_space<vmem>>) attributes {dimension_semantics = [], scalar_prefetch = 0 : i64, scratch_operands = 0 : i64, tpu.core_type = #tpu.core_type<tc>} {
    %c0 = arith.constant 0 : index
    %c0_0 = arith.constant 0 : index
    %0 = vector.load %arg0[%c0, %c0_0] : memref<16x8xf32, #tpu.memory_space<vmem>>, vector<16x8xf32>
    %c0_1 = arith.constant 0 : index
    %c0_2 = arith.constant 0 : index
    %1 = vector.load %arg1[%c0_1, %c0_2] : memref<8x80xf32, #tpu.memory_space<vmem>>, vector<8x80xf32>
    %c0_3 = arith.constant 0 : index
    %c0_4 = arith.constant 0 : index
    %2 = vector.load %arg2[%c0_3, %c0_4] : memref<1x80xf32, #tpu.memory_space<vmem>>, vector<1x80xf32>
    %3 = vector.extract_strided_slice %1 {offsets = [0, 0], sizes = [8, 8], strides = [1, 1]} : vector<8x80xf32> to vector<8x8xf32>
    %cst = arith.constant dense<0.000000e+00> : vector<16x8xf32>
    %4 = tpu.matmul %0, %3, %cst {dimension_numbers = #tpu.dot_dimension_numbers<[1], [0], [0], [1], [0, 0, 1, 1], [], []>} : vector<16x8xf32>, vector<8x8xf32>, vector<16x8xf32> -> vector<16x8xf32>
    %5 = vector.extract_strided_slice %2 {offsets = [0, 0], sizes = [1, 8], strides = [1, 1]} : vector<1x80xf32> to vector<1x8xf32>
    %6 = vector.broadcast %5 : vector<1x8xf32> to vector<16x8xf32>
    %7 = arith.addf %4, %6 : vector<16x8xf32>
    %8 = vector.extract_strided_slice %1 {offsets = [0, 8], sizes = [8, 36], strides = [1, 1]} : vector<8x80xf32> to vector<8x36xf32>
    %9 = vector.extract_strided_slice %2 {offsets = [0, 8], sizes = [1, 36], strides = [1, 1]} : vector<1x80xf32> to vector<1x36xf32>
    %cst_5 = arith.constant dense<0.000000e+00> : vector<16x36xf32>
    %10 = tpu.matmul %7, %8, %cst_5 {dimension_numbers = #tpu.dot_dimension_numbers<[1], [0], [0], [1], [0, 0, 1, 1], [], []>} : vector<16x8xf32>, vector<8x36xf32>, vector<16x36xf32> -> vector<16x36xf32>
    %11 = vector.broadcast %9 : vector<1x36xf32> to vector<16x36xf32>
    %12 = arith.addf %10, %11 : vector<16x36xf32>
    %13 = vector.extract_strided_slice %12 {offsets = [0, 0], sizes = [16, 4], strides = [1, 1]} : vector<16x36xf32> to vector<16x4xf32>
    %14 = tpu.iota {dimensions = array<i32: 1>} : vector<16x4xi32>
    %cst_6 = arith.constant dense<0xFF800000> : vector<16xf32>
    %15 = vector.multi_reduction <maximumf>, %13, %cst_6 [1] : vector<16x4xf32> to vector<16xf32>
    %16 = vector.shape_cast %15 : vector<16xf32> to vector<16x1xf32>
    %17 = vector.broadcast %16 : vector<16x1xf32> to vector<16x4xf32>
    %18 = arith.cmpf oge, %13, %17 : vector<16x4xf32>
    %c4_i32 = arith.constant 4 : i32
    %19 = vector.broadcast %c4_i32 : i32 to vector<16x4xi32>
    %20 = arith.select %18, %14, %19 : vector<16x4xi1>, vector<16x4xi32>
    %cst_7 = arith.constant dense<2147483647> : vector<16xi32>
    %21 = vector.multi_reduction <minsi>, %20, %cst_7 [1] : vector<16x4xi32> to vector<16xi32>
    %22 = vector.shape_cast %21 : vector<16xi32> to vector<16x1xi32>
    %23 = vector.broadcast %22 : vector<16x1xi32> to vector<16x4xi32>
    %24 = arith.cmpi eq, %14, %23 : vector<16x4xi32>
    %25 = arith.extui %24 : vector<16x4xi1> to vector<16x4xi32>
    %26 = arith.sitofp %25 : vector<16x4xi32> to vector<16x4xf32>
    %27 = vector.broadcast %16 : vector<16x1xf32> to vector<16x4xf32>
    %28 = arith.subf %13, %27 : vector<16x4xf32>
    %29 = math.exp %28 : vector<16x4xf32>
    %cst_8 = arith.constant dense<0.000000e+00> : vector<16xf32>
    %30 = vector.multi_reduction <add>, %29, %cst_8 [1] : vector<16x4xf32> to vector<16xf32>
    %31 = vector.shape_cast %30 : vector<16xf32> to vector<16x1xf32>
    %32 = tpu.reciprocal %31 {approx = true} : vector<16x1xf32> -> vector<16x1xf32>
    %cst_9 = arith.constant 0.000000e+00 : f32
    %33 = vector.broadcast %cst_9 : f32 to vector<16x8xf32>
    %34 = vector.extract_strided_slice %12 {offsets = [0, 4], sizes = [16, 8], strides = [1, 1]} : vector<16x36xf32> to vector<16x8xf32>
    %35 = vector.extract_strided_slice %26 {offsets = [0, 0], sizes = [16, 1], strides = [1, 1]} : vector<16x4xf32> to vector<16x1xf32>
    %36 = vector.broadcast %35 : vector<16x1xf32> to vector<16x8xf32>
    %37 = arith.mulf %36, %34 : vector<16x8xf32>
    %38 = arith.addf %33, %37 : vector<16x8xf32>
    %39 = vector.extract_strided_slice %12 {offsets = [0, 12], sizes = [16, 8], strides = [1, 1]} : vector<16x36xf32> to vector<16x8xf32>
    %40 = vector.extract_strided_slice %26 {offsets = [0, 1], sizes = [16, 1], strides = [1, 1]} : vector<16x4xf32> to vector<16x1xf32>
    %41 = vector.broadcast %40 : vector<16x1xf32> to vector<16x8xf32>
    %42 = arith.mulf %41, %39 : vector<16x8xf32>
    %43 = arith.addf %38, %42 : vector<16x8xf32>
    %44 = vector.extract_strided_slice %12 {offsets = [0, 20], sizes = [16, 8], strides = [1, 1]} : vector<16x36xf32> to vector<16x8xf32>
    %45 = vector.extract_strided_slice %26 {offsets = [0, 2], sizes = [16, 1], strides = [1, 1]} : vector<16x4xf32> to vector<16x1xf32>
    %46 = vector.broadcast %45 : vector<16x1xf32> to vector<16x8xf32>
    %47 = arith.mulf %46, %44 : vector<16x8xf32>
    %48 = arith.addf %43, %47 : vector<16x8xf32>
    %49 = vector.extract_strided_slice %12 {offsets = [0, 28], sizes = [16, 8], strides = [1, 1]} : vector<16x36xf32> to vector<16x8xf32>
    %50 = vector.extract_strided_slice %26 {offsets = [0, 3], sizes = [16, 1], strides = [1, 1]} : vector<16x4xf32> to vector<16x1xf32>
    %51 = vector.broadcast %50 : vector<16x1xf32> to vector<16x8xf32>
    %52 = arith.mulf %51, %49 : vector<16x8xf32>
    %53 = arith.addf %48, %52 : vector<16x8xf32>
    %54 = vector.broadcast %32 : vector<16x1xf32> to vector<16x8xf32>
    %55 = arith.mulf %54, %53 : vector<16x8xf32>
    %56 = vector.extract_strided_slice %1 {offsets = [0, 44], sizes = [8, 36], strides = [1, 1]} : vector<8x80xf32> to vector<8x36xf32>
    %57 = vector.extract_strided_slice %2 {offsets = [0, 44], sizes = [1, 36], strides = [1, 1]} : vector<1x80xf32> to vector<1x36xf32>
    %cst_10 = arith.constant dense<0.000000e+00> : vector<16x36xf32>
    %58 = tpu.matmul %55, %56, %cst_10 {dimension_numbers = #tpu.dot_dimension_numbers<[1], [0], [0], [1], [0, 0, 1, 1], [], []>} : vector<16x8xf32>, vector<8x36xf32>, vector<16x36xf32> -> vector<16x36xf32>
    %59 = vector.broadcast %57 : vector<1x36xf32> to vector<16x36xf32>
    %60 = arith.addf %58, %59 : vector<16x36xf32>
    %61 = vector.extract_strided_slice %60 {offsets = [0, 0], sizes = [16, 4], strides = [1, 1]} : vector<16x36xf32> to vector<16x4xf32>
    %62 = tpu.iota {dimensions = array<i32: 1>} : vector<16x4xi32>
    %cst_11 = arith.constant dense<0xFF800000> : vector<16xf32>
    %63 = vector.multi_reduction <maximumf>, %61, %cst_11 [1] : vector<16x4xf32> to vector<16xf32>
    %64 = vector.shape_cast %63 : vector<16xf32> to vector<16x1xf32>
    %65 = vector.broadcast %64 : vector<16x1xf32> to vector<16x4xf32>
    %66 = arith.cmpf oge, %61, %65 : vector<16x4xf32>
    %c4_i32_12 = arith.constant 4 : i32
    %67 = vector.broadcast %c4_i32_12 : i32 to vector<16x4xi32>
    %68 = arith.select %66, %62, %67 : vector<16x4xi1>, vector<16x4xi32>
    %cst_13 = arith.constant dense<2147483647> : vector<16xi32>
    %69 = vector.multi_reduction <minsi>, %68, %cst_13 [1] : vector<16x4xi32> to vector<16xi32>
    %70 = vector.shape_cast %69 : vector<16xi32> to vector<16x1xi32>
    %71 = vector.broadcast %70 : vector<16x1xi32> to vector<16x4xi32>
    %72 = arith.cmpi eq, %62, %71 : vector<16x4xi32>
    %73 = arith.extui %72 : vector<16x4xi1> to vector<16x4xi32>
    %74 = arith.sitofp %73 : vector<16x4xi32> to vector<16x4xf32>
    %75 = vector.broadcast %64 : vector<16x1xf32> to vector<16x4xf32>
    %76 = arith.subf %61, %75 : vector<16x4xf32>
    %77 = math.exp %76 : vector<16x4xf32>
    %cst_14 = arith.constant dense<0.000000e+00> : vector<16xf32>
    %78 = vector.multi_reduction <add>, %77, %cst_14 [1] : vector<16x4xf32> to vector<16xf32>
    %79 = vector.shape_cast %78 : vector<16xf32> to vector<16x1xf32>
    %80 = tpu.reciprocal %79 {approx = true} : vector<16x1xf32> -> vector<16x1xf32>
    %cst_15 = arith.constant 0.000000e+00 : f32
    %81 = vector.broadcast %cst_15 : f32 to vector<16x8xf32>
    %82 = vector.extract_strided_slice %60 {offsets = [0, 4], sizes = [16, 8], strides = [1, 1]} : vector<16x36xf32> to vector<16x8xf32>
    %83 = vector.extract_strided_slice %74 {offsets = [0, 0], sizes = [16, 1], strides = [1, 1]} : vector<16x4xf32> to vector<16x1xf32>
    %84 = vector.broadcast %83 : vector<16x1xf32> to vector<16x8xf32>
    %85 = arith.mulf %84, %82 : vector<16x8xf32>
    %86 = arith.addf %81, %85 : vector<16x8xf32>
    %87 = vector.extract_strided_slice %60 {offsets = [0, 12], sizes = [16, 8], strides = [1, 1]} : vector<16x36xf32> to vector<16x8xf32>
    %88 = vector.extract_strided_slice %74 {offsets = [0, 1], sizes = [16, 1], strides = [1, 1]} : vector<16x4xf32> to vector<16x1xf32>
    %89 = vector.broadcast %88 : vector<16x1xf32> to vector<16x8xf32>
    %90 = arith.mulf %89, %87 : vector<16x8xf32>
    %91 = arith.addf %86, %90 : vector<16x8xf32>
    %92 = vector.extract_strided_slice %60 {offsets = [0, 20], sizes = [16, 8], strides = [1, 1]} : vector<16x36xf32> to vector<16x8xf32>
    %93 = vector.extract_strided_slice %74 {offsets = [0, 2], sizes = [16, 1], strides = [1, 1]} : vector<16x4xf32> to vector<16x1xf32>
    %94 = vector.broadcast %93 : vector<16x1xf32> to vector<16x8xf32>
    %95 = arith.mulf %94, %92 : vector<16x8xf32>
    %96 = arith.addf %91, %95 : vector<16x8xf32>
    %97 = vector.extract_strided_slice %60 {offsets = [0, 28], sizes = [16, 8], strides = [1, 1]} : vector<16x36xf32> to vector<16x8xf32>
    %98 = vector.extract_strided_slice %74 {offsets = [0, 3], sizes = [16, 1], strides = [1, 1]} : vector<16x4xf32> to vector<16x1xf32>
    %99 = vector.broadcast %98 : vector<16x1xf32> to vector<16x8xf32>
    %100 = arith.mulf %99, %97 : vector<16x8xf32>
    %101 = arith.addf %96, %100 : vector<16x8xf32>
    %102 = vector.broadcast %80 : vector<16x1xf32> to vector<16x8xf32>
    %103 = arith.mulf %102, %101 : vector<16x8xf32>
    %104 = arith.addf %7, %103 : vector<16x8xf32>
    %105 = tpu.iota {dimensions = array<i32: 1>} : vector<1x8xi32>
    %cst_16 = arith.constant 0.000000e+00 : f32
    %106 = vector.broadcast %cst_16 : f32 to vector<1x1xf32>
    %107 = vector.extract_strided_slice %104 {offsets = [0, 0], sizes = [8, 8], strides = [1, 1]} : vector<16x8xf32> to vector<8x8xf32>
    %cst_17 = arith.constant dense<0.000000e+00> : vector<8xf32>
    %108 = vector.multi_reduction <add>, %107, %cst_17 [0] : vector<8x8xf32> to vector<8xf32>
    %109 = vector.shape_cast %108 : vector<8xf32> to vector<1x8xf32>
    %cst_18 = arith.constant 1.250000e-01 : f32
    %110 = vector.broadcast %cst_18 : f32 to vector<1x8xf32>
    %111 = arith.mulf %109, %110 : vector<1x8xf32>
    %cst_19 = arith.constant dense<0xFF800000> : vector<1xf32>
    %112 = vector.multi_reduction <maximumf>, %111, %cst_19 [1] : vector<1x8xf32> to vector<1xf32>
    %113 = vector.shape_cast %112 : vector<1xf32> to vector<1x1xf32>
    %114 = vector.broadcast %113 : vector<1x1xf32> to vector<1x8xf32>
    %115 = arith.subf %111, %114 : vector<1x8xf32>
    %116 = math.exp %115 : vector<1x8xf32>
    %cst_20 = arith.constant dense<0.000000e+00> : vector<1xf32>
    %117 = vector.multi_reduction <add>, %116, %cst_20 [1] : vector<1x8xf32> to vector<1xf32>
    %118 = vector.shape_cast %117 : vector<1xf32> to vector<1x1xf32>
    %119 = math.log %118 : vector<1x1xf32>
    %120 = arith.addf %113, %119 : vector<1x1xf32>
    %c0_21 = arith.constant 0 : index
    %121 = memref.load %arg3[%c0_21] : memref<2xi32, #tpu.memory_space<smem>>
    %122 = vector.broadcast %121 : i32 to vector<1x8xi32>
    %123 = arith.cmpi eq, %105, %122 : vector<1x8xi32>
    %cst_22 = arith.constant 0.000000e+00 : f32
    %124 = vector.broadcast %cst_22 : f32 to vector<1x8xf32>
    %125 = arith.select %123, %111, %124 : vector<1x8xi1>, vector<1x8xf32>
    %cst_23 = arith.constant dense<0.000000e+00> : vector<1xf32>
    %126 = vector.multi_reduction <add>, %125, %cst_23 [1] : vector<1x8xf32> to vector<1xf32>
    %127 = vector.shape_cast %126 : vector<1xf32> to vector<1x1xf32>
    %128 = arith.subf %120, %127 : vector<1x1xf32>
    %129 = arith.addf %106, %128 : vector<1x1xf32>
    %130 = vector.extract_strided_slice %104 {offsets = [8, 0], sizes = [8, 8], strides = [1, 1]} : vector<16x8xf32> to vector<8x8xf32>
    %cst_24 = arith.constant dense<0.000000e+00> : vector<8xf32>
    %131 = vector.multi_reduction <add>, %130, %cst_24 [0] : vector<8x8xf32> to vector<8xf32>
    %132 = vector.shape_cast %131 : vector<8xf32> to vector<1x8xf32>
    %cst_25 = arith.constant 1.250000e-01 : f32
    %133 = vector.broadcast %cst_25 : f32 to vector<1x8xf32>
    %134 = arith.mulf %132, %133 : vector<1x8xf32>
    %cst_26 = arith.constant dense<0xFF800000> : vector<1xf32>
    %135 = vector.multi_reduction <maximumf>, %134, %cst_26 [1] : vector<1x8xf32> to vector<1xf32>
    %136 = vector.shape_cast %135 : vector<1xf32> to vector<1x1xf32>
    %137 = vector.broadcast %136 : vector<1x1xf32> to vector<1x8xf32>
    %138 = arith.subf %134, %137 : vector<1x8xf32>
    %139 = math.exp %138 : vector<1x8xf32>
    %cst_27 = arith.constant dense<0.000000e+00> : vector<1xf32>
    %140 = vector.multi_reduction <add>, %139, %cst_27 [1] : vector<1x8xf32> to vector<1xf32>
    %141 = vector.shape_cast %140 : vector<1xf32> to vector<1x1xf32>
    %142 = math.log %141 : vector<1x1xf32>
    %143 = arith.addf %136, %142 : vector<1x1xf32>
    %c1 = arith.constant 1 : index
    %144 = memref.load %arg3[%c1] : memref<2xi32, #tpu.memory_space<smem>>
    %145 = vector.broadcast %144 : i32 to vector<1x8xi32>
    %146 = arith.cmpi eq, %105, %145 : vector<1x8xi32>
    %cst_28 = arith.constant 0.000000e+00 : f32
    %147 = vector.broadcast %cst_28 : f32 to vector<1x8xf32>
    %148 = arith.select %146, %134, %147 : vector<1x8xi1>, vector<1x8xf32>
    %cst_29 = arith.constant dense<0.000000e+00> : vector<1xf32>
    %149 = vector.multi_reduction <add>, %148, %cst_29 [1] : vector<1x8xf32> to vector<1xf32>
    %150 = vector.shape_cast %149 : vector<1xf32> to vector<1x1xf32>
    %151 = arith.subf %143, %150 : vector<1x1xf32>
    %152 = arith.addf %129, %151 : vector<1x1xf32>
    %cst_30 = arith.constant 5.000000e-01 : f32
    %153 = vector.broadcast %cst_30 : f32 to vector<1x1xf32>
    %154 = arith.mulf %152, %153 : vector<1x1xf32>
    %c0_31 = arith.constant 0 : index
    %c0_32 = arith.constant 0 : index
    %155 = vector.load %arg4[%c0_31, %c0_32] : memref<1x1xf32, #tpu.memory_space<vmem>>, vector<1x1xf32>
    tpu.vector_store %arg4[%c0_31, %c0_32], %154 {strides = array<i32>} : memref<1x1xf32, #tpu.memory_space<vmem>>, vector<1x1xf32>,
    return
  }
}

</mosaic_0001>

<llo_original>
// kernel: moe_model_loss.1
$region0: #{moe_model_loss.1}
  #allocation0 [shape = 'u32[]', space=smem, size = 0x4, offset = 0x4, fixed_abs, tag = 'smem constant byte address 0x4 - core index']
  #allocation1 [shape = 'u32[144,128]{1,0:T(1,128)}', space=vmem, size = 0x12000, scoped, tag = 'internal scratch']
  %s0 = inlined_call_operand.hbm [shape: f32[16,8], index: 0, kind: input, shape index: {}]
  %s1 = inlined_call_operand.vmem [shape: f32[8,80], index: 1, kind: input, shape index: {}]
  %s2 = inlined_call_operand.vmem [shape: f32[1,80], index: 2, kind: input, shape index: {}]
  %s3 = inlined_call_operand.vmem [shape: s32[2], index: 3, kind: input, shape index: {}]
  %s4 = inlined_call_operand.hbm [shape: f32[1,1], index: 4, kind: output, shape index: {}]
  %s5 = sld [smem:[#allocation0]]
  $region34: #{moe_model_loss.1} parent=0
    _
  %s7 = ssub.s32 1, %s5
  %s8 = scalar_select 0, %s7, %s5
  $region1: #{moe_model_loss.1} parent=0
    #allocation2 [shape = 'u8[8192]{0}', space=vmem, size = 0x2000, scoped, tag = 'input window, operand 0, single buffered']
    #allocation3 [shape = 's32[1]{0}', space=sflag, size = 0x4, scoped, tag = 'scoped memory for moe_model_loss.1']
    #allocation4 [shape = 's32[1]{0}', space=sflag, size = 0x4, scoped, tag = 'scoped memory for moe_model_loss.1']
    #allocation5 [shape = 's32[1]{0}', space=sflag, size = 0x4, scoped, tag = 'scoped memory for moe_model_loss.1']
    #allocation6 [shape = 'u8[512]{0}', space=smem, size = 0x200, scoped, tag = 'input window, operand 3, single buffered']
    #allocation7 [shape = 'u8[512]{0}', space=vmem, size = 0x400, scoped, tag = 'output window, operand 0, single buffered']
    %9 = vsyncpa [#allocation3], 0
    %10 = vsyncpa [#allocation5], 0
    %11 = vsyncpa [#allocation4], 0
    // Predicated region
    $region2: #{moe_model_loss.1} parent=1 // pred_check
      _
    $region3: #{moe_model_loss.1} parent=1 // pred_check_branch
      %13 = sbr.rel (0) target = $region5
    $region4: #{moe_model_loss.1} parent=1 // pred_region
      %s15 = ssub.s32 256, 256
      %16 = vsyncadd [#allocation3], %s15
      %s17 = sshll.u32 [#allocation2], 4
      %s18 = int_to_ptr.vmem [resolvable:$true] %s17
      %23 = dma.hbm_to_vmem [thread:$0]  %s0, 256, %s18, [#allocation3], 128, 128, 8
    $region5: #{moe_model_loss.1} parent=1 // pred_fallthru
      _
    // Predicated region
    $region6: #{moe_model_loss.1} parent=1 // pred_check
      _
    $region7: #{moe_model_loss.1} parent=1 // pred_check_branch
      %25 = sbr.rel (0) target = $region9
    $region8: #{moe_model_loss.1} parent=1 // pred_region
      _
    $region9: #{moe_model_loss.1} parent=1 // pred_fallthru
      _
    // Predicated region
    $region10: #{moe_model_loss.1} parent=1 // pred_check
      _
    $region11: #{moe_model_loss.1} parent=1 // pred_check_branch
      %27 = sbr.rel (0) target = $region13
    $region12: #{moe_model_loss.1} parent=1 // pred_region
      _
    $region13: #{moe_model_loss.1} parent=1 // pred_fallthru
      _
    // Predicated region
    $region14: #{moe_model_loss.1} parent=1 // pred_check
      _
    $region15: #{moe_model_loss.1} parent=1 // pred_check_branch
      %29 = sbr.rel (0) target = $region17
    $region16: #{moe_model_loss.1} parent=1 // pred_region
      %s31 = ssub.s32 16, 16
      %32 = vsyncadd [#allocation5], %s31
      %s34 = sshll.u32 %s3, 4
      %s35 = int_to_ptr.vmem [resolvable:$true] %s34
      %37 = dma.vmem_to_smem %s35, 16, [#allocation6], [#allocation5]
    $region17: #{moe_model_loss.1} parent=1 // pred_fallthru
      _
    // Predicated region
    $region18: #{moe_model_loss.1} parent=1 // pred_check
      _
    $region19: #{moe_model_loss.1} parent=1 // pred_check_branch
      %39 = sbr.rel (0) target = $region21
    $region20: #{moe_model_loss.1} parent=1 // pred_region
      %40 = dma.done [#allocation3], 256
    $region21: #{moe_model_loss.1} parent=1 // pred_fallthru
      _
    // Predicated region
    $region22: #{moe_model_loss.1} parent=1 // pred_check
      _
    $region23: #{moe_model_loss.1} parent=1 // pred_check_branch
      %42 = sbr.rel (0) target = $region25
    $region24: #{moe_model_loss.1} parent=1 // pred_region
      %43 = dma.done [#allocation5], 16
    $region25: #{moe_model_loss.1} parent=1 // pred_fallthru
      _
    %44 = sfence
    %v45 = vld [vmem:[#allocation2] sm:$0xff]
    %v46 = vld [vmem:[#allocation2 + $0x8] sm:$0xff]
    %v47 = vld [vmem:[%s1] sm:$0xff]
    %v48 = vld [vmem:[%s2] sm:$0x1]
    %v50 = vlaneseq
    %v51 = vshrl.u32 %v50, 7
    %v52 = vsub.s32 0, %v51
    %v53 = vrot.slane %v48, %v52
    %vm55 = vcmask 64512
    %v57 = vsel %vm55, %v45, 0
    %v60 = vsel %vm55, %v46, 0
    %62 = vmatprep.subr.mxu0 0.0
    %63 = vmatpush1.msra.mxu0 %v47
    %64 = vmatprep.subr.mxu0 0.0
    %65 = vmatpush1.msra.mxu0 0.0
    %66 = vmatprep.subr.mxu0 0.0
    %67 = vmatpush1.msra.mxu0 0.0
    %68 = vmatprep.subr.mxu0 0.0
    %69 = vmatpush1.msra.mxu0 0.0
    %70 = vmatprep.subr.mxu0 0.0
    %71 = vmatpush1.msra.mxu0 0.0
    %72 = vmatprep.subr.mxu0 0.0
    %73 = vmatpush1.msra.mxu0 0.0
    %74 = vmatprep.subr.mxu0 0.0
    %75 = vmatpush1.msra.mxu0 0.0
    %76 = vmatprep.subr.mxu0 0.0
    %77 = vmatpush1.msra.mxu0 0.0
    %78 = vmatprep.subr.mxu0 0.0
    %79 = vmatpush1.msra.mxu0 0.0
    %80 = vmatprep.subr.mxu0 0.0
    %81 = vmatpush1.msra.mxu0 0.0
    %82 = vmatprep.subr.mxu0 0.0
    %83 = vmatpush1.msra.mxu0 0.0
    %84 = vmatprep.subr.mxu0 0.0
    %85 = vmatpush1.msra.mxu0 0.0
    %86 = vmatprep.subr.mxu0 0.0
    %87 = vmatpush1.msra.mxu0 0.0
    %88 = vmatprep.subr.mxu0 0.0
    %89 = vmatpush1.msra.mxu0 0.0
    %90 = vmatprep.subr.mxu0 0.0
    %91 = vmatpush1.msra.mxu0 0.0
    %92 = vmatprep.subr.mxu0 0.0
    %93 = vmatpush1.msra.mxu0 0.0
    %94 = vmatprep.subr.mxu0 0.0
    %95 = vmatpush1.msra.mxu0 0.0
    %96 = vmatprep.subr.mxu0 0.0
    %97 = vmatpush1.msra.mxu0 0.0
    %98 = vmatprep.subr.mxu0 0.0
    %99 = vmatpush1.msra.mxu0 0.0
    %100 = vmatprep.subr.mxu0 0.0
    %101 = vmatpush1.msra.mxu0 0.0
    %102 = vmatprep.subr.mxu0 0.0
    %103 = vmatpush1.msra.mxu0 0.0
    %104 = vmatprep.subr.mxu0 0.0
    %105 = vmatpush1.msra.mxu0 0.0
    %106 = vmatprep.subr.mxu0 0.0
    %107 = vmatpush1.msra.mxu0 0.0
    %108 = vmatprep.subr.mxu0 0.0
    %109 = vmatpush1.msra.mxu0 0.0
    %110 = vmatprep.subr.mxu0 0.0
    %111 = vmatpush1.msra.mxu0 0.0
    %112 = vmatprep.subr.mxu0 0.0
    %113 = vmatpush1.msra.mxu0 0.0
    %114 = vmatprep.subr.mxu0 0.0
    %115 = vmatpush1.msra.mxu0 0.0
    %116 = vmatprep.subr.mxu0 0.0
    %117 = vmatpush1.msra.mxu0 0.0
    %118 = vmatprep.subr.mxu0 0.0
    %119 = vmatpush1.msra.mxu0 0.0
    %120 = vmatprep.subr.mxu0 0.0
    %121 = vmatpush1.msra.mxu0 0.0
    %122 = vmatprep.subr.mxu0 0.0
    %123 = vmatpush1.msra.mxu0 0.0
    %124 = vmatprep.subr.mxu0 0.0
    %125 = vmatpush1.msra.mxu0 0.0
    %126 = vmatprep.mubr.f32.mxu0 0.0
    %127 = vmatmul.mubr.f32.gmra.mrb[0].mxu0 %v57
    %v128 = vpop.f32.mrb[0].mxu0
    %v129 = vadd.f32 %v53, %v128
    %v130 = vpop.f32.mrb[0].mxu0
    %131 = vmatprep.mubr.f32.mxu0 0.0
    %132 = vmatmul.mubr.f32.gmra.mrb[0].mxu0 %v60
    %v133 = vpop.f32.mrb[0].mxu0
    %v134 = vadd.f32 %v53, %v133
    %v135 = vpop.f32.mrb[0].mxu0
    %136 = vdwg.mxu0
    %138 = vrot.lane.b32.xlu0 %v47, 120
    %v139 = vpop.permute.xlu0 %138
    %141 = vrot.lane.b32.xlu0 %v53, 120
    %v142 = vpop.permute.xlu0 %141
    %v145 = vsel %vm55, %v129, 0
    %v148 = vsel %vm55, %v134, 0
    %150 = vmatprep.subr.mxu0 0.0
    %151 = vmatpush1.msra.mxu0 %v139
    %152 = vmatprep.subr.mxu0 0.0
    %153 = vmatpush1.msra.mxu0 0.0
    %154 = vmatprep.subr.mxu0 0.0
    %155 = vmatpush1.msra.mxu0 0.0
    %156 = vmatprep.subr.mxu0 0.0
    %157 = vmatpush1.msra.mxu0 0.0
    %158 = vmatprep.subr.mxu0 0.0
    %159 = vmatpush1.msra.mxu0 0.0
    %160 = vmatprep.subr.mxu0 0.0
    %161 = vmatpush1.msra.mxu0 0.0
    %162 = vmatprep.subr.mxu0 0.0
    %163 = vmatpush1.msra.mxu0 0.0
    %164 = vmatprep.subr.mxu0 0.0
    %165 = vmatpush1.msra.mxu0 0.0
    %166 = vmatprep.subr.mxu0 0.0
    %167 = vmatpush1.msra.mxu0 0.0
    %168 = vmatprep.subr.mxu0 0.0
    %169 = vmatpush1.msra.mxu0 0.0
    %170 = vmatprep.subr.mxu0 0.0
    %171 = vmatpush1.msra.mxu0 0.0
    %172 = vmatprep.subr.mxu0 0.0
    %173 = vmatpush1.msra.mxu0 0.0
    %174 = vmatprep.subr.mxu0 0.0
    %175 = vmatpush1.msra.mxu0 0.0
    %176 = vmatprep.subr.mxu0 0.0
    %177 = vmatpush1.msra.mxu0 0.0
    %178 = vmatprep.subr.mxu0 0.0
    %179 = vmatpush1.msra.mxu0 0.0
    %180 = vmatprep.subr.mxu0 0.0
    %181 = vmatpush1.msra.mxu0 0.0
    %182 = vmatprep.subr.mxu0 0.0
    %183 = vmatpush1.msra.mxu0 0.0
    %184 = vmatprep.subr.mxu0 0.0
    %185 = vmatpush1.msra.mxu0 0.0
    %186 = vmatprep.subr.mxu0 0.0
    %187 = vmatpush1.msra.mxu0 0.0
    %188 = vmatprep.subr.mxu0 0.0
    %189 = vmatpush1.msra.mxu0 0.0
    %190 = vmatprep.subr.mxu0 0.0
    %191 = vmatpush1.msra.mxu0 0.0
    %192 = vmatprep.subr.mxu0 0.0
    %193 = vmatpush1.msra.mxu0 0.0
    %194 = vmatprep.subr.mxu0 0.0
    %195 = vmatpush1.msra.mxu0 0.0
    %196 = vmatprep.subr.mxu0 0.0
    %197 = vmatpush1.msra.mxu0 0.0
    %198 = vmatprep.subr.mxu0 0.0
    %199 = vmatpush1.msra.mxu0 0.0
    %200 = vmatprep.subr.mxu0 0.0
    %201 = vmatpush1.msra.mxu0 0.0
    %202 = vmatprep.subr.mxu0 0.0
    %203 = vmatpush1.msra.mxu0 0.0
    %204 = vmatprep.subr.mxu0 0.0
    %205 = vmatpush1.msra.mxu0 0.0
    %206 = vmatprep.subr.mxu0 0.0
    %207 = vmatpush1.msra.mxu0 0.0
    %208 = vmatprep.subr.mxu0 0.0
    %209 = vmatpush1.msra.mxu0 0.0
    %210 = vmatprep.subr.mxu0 0.0
    %211 = vmatpush1.msra.mxu0 0.0
    %212 = vmatprep.subr.mxu0 0.0
    %213 = vmatpush1.msra.mxu0 0.0
    %214 = vmatprep.mubr.f32.mxu0 0.0
    %215 = vmatmul.mubr.f32.gmra.mrb[0].mxu0 %v145
    %v216 = vpop.f32.mrb[0].mxu0
    %v217 = vadd.f32 %v142, %v216
    %v218 = vpop.f32.mrb[0].mxu0
    %219 = vmatprep.mubr.f32.mxu0 0.0
    %220 = vmatmul.mubr.f32.gmra.mrb[0].mxu0 %v148
    %v221 = vpop.f32.mrb[0].mxu0
    %v222 = vadd.f32 %v142, %v221
    %v223 = vpop.f32.mrb[0].mxu0
    %224 = vdwg.mxu0
    %v225 = vlaneseq
    %v226 = vand.u32 %v225, 127
    %vm227 = vcmask 31744
    %v228 = vsel %vm227, %v217, -inf
    %229 = vmax.xlane.f32.xlu0 %v228
    %v230 = vpop.xlane.xlu0 %229
    %v231 = vsel %vm227, %v222, -inf
    %232 = vmax.xlane.f32.xlu0 %v231
    %v233 = vpop.xlane.xlu0 %232
    %vm234 = vcmp.ge.f32.partialorder %v217, %v230
    %vm235 = vcmp.ge.f32.partialorder %v222, %v233
    %v236 = vsel %vm234, %v226, 4
    %v237 = vsel %vm235, %v226, 4
    %v238 = vsel %vm227, %v236, 2147483647
    %v239 = vand.u32 %v238, 65535
    %v240 = vshra.s32 %v238, 16
    %v241 = vcvt.s32.f32 %v239
    %v242 = vcvt.s32.f32 %v240
    %243 = vmin.xlane.f32.xlu0 %v242
    %v244 = vpop.xlane.xlu0 %243
    %vm245 = vcmp.eq.f32.partialorder %v242, %v244
    %v246 = vsel %vm245, %v241, inf
    %247 = vmin.xlane.f32.xlu0 %v246
    %v248 = vpop.xlane.xlu0 %247
    %v249 = vcvt.f32.s32 %v248
    %v250 = vcvt.f32.s32 %v244
    %v251 = vshll.u32 %v250, 16
    %v252 = vadd.s32 %v251, %v249
    %v253 = vsel %vm227, %v237, 2147483647
    %v254 = vand.u32 %v253, 65535
    %v255 = vshra.s32 %v253, 16
    %v256 = vcvt.s32.f32 %v254
    %v257 = vcvt.s32.f32 %v255
    %258 = vmin.xlane.f32.xlu0 %v257
    %v259 = vpop.xlane.xlu0 %258
    %vm260 = vcmp.eq.f32.partialorder %v257, %v259
    %v261 = vsel %vm260, %v256, inf
    %262 = vmin.xlane.f32.xlu0 %v261
    %v263 = vpop.xlane.xlu0 %262
    %v264 = vcvt.f32.s32 %v263
    %v265 = vcvt.f32.s32 %v259
    %v266 = vshll.u32 %v265, 16
    %v267 = vadd.s32 %v266, %v264
    %vm268 = vcmp.eq.s32.totalorder %v226, %v252
    %vm269 = vcmp.eq.s32.totalorder %v226, %v267
    %v270 = vsel %vm268, 1, 0
    %v271 = vsel %vm269, 1, 0
    %v272 = vcvt.s32.f32 %v270
    %v273 = vcvt.s32.f32 %v271
    %v274 = vsub.f32 %v217, %v230
    %v275 = vsub.f32 %v222, %v233
    %v276 = vmul.f32 %v274, 1.442695
    %v277 = vpow.pop %v276
    %v278 = vmul.f32 %v275, 1.442695
    %v279 = vpow.pop %v278
    %v280 = vsel %vm227, %v277, 0.0
    %281 = vadd.xlane.f32.xlu0 %v280
    %v282 = vpop.xlane.xlu0 %281
    %v283 = vsel %vm227, %v279, 0.0
    %284 = vadd.xlane.f32.xlu0 %v283
    %v285 = vpop.xlane.xlu0 %284
    %v286 = vrcp.pop %v282
    %v287 = vrcp.pop %v285
    %289 = vset.pattern.permute.xlu0 0
    %290 = vperm.xlu0 %289, %v272
    %v291 = vpop.permute.xlu0 %290
    %294 = vset.pattern.permute.xlu0 0
    %295 = vperm.xlu0 %294, %v273
    %v296 = vpop.permute.xlu0 %295
    %v298 = vmul.f32 %v291, %v217
    %v299 = vmul.f32 %v296, %v222
    %v300 = vadd.f32 %v298, 0.0
    %v301 = vadd.f32 %v299, 0.0
    %302 = vset.pattern.permute.xlu0 1
    %303 = vperm.xlu0 %302, %v272
    %v304 = vpop.permute.xlu0 %303
    %306 = vset.pattern.permute.xlu0 1
    %307 = vperm.xlu0 %306, %v273
    %v308 = vpop.permute.xlu0 %307
    %v310 = vmul.f32 %v304, %v217
    %v311 = vmul.f32 %v308, %v222
    %314 = vrot.lane.b32.xlu0 %v310, 120
    %v315 = vpop.permute.xlu0 %314
    %316 = vrot.lane.b32.xlu0 %v311, 120
    %v317 = vpop.permute.xlu0 %316
    %v320 = vadd.f32 %v300, %v315
    %v321 = vadd.f32 %v301, %v317
    %322 = vset.pattern.permute.xlu0 2
    %323 = vperm.xlu0 %322, %v272
    %v324 = vpop.permute.xlu0 %323
    %326 = vset.pattern.permute.xlu0 2
    %327 = vperm.xlu0 %326, %v273
    %v328 = vpop.permute.xlu0 %327
    %v330 = vmul.f32 %v324, %v217
    %v331 = vmul.f32 %v328, %v222
    %334 = vrot.lane.b32.xlu0 %v330, 112
    %v335 = vpop.permute.xlu0 %334
    %336 = vrot.lane.b32.xlu0 %v331, 112
    %v337 = vpop.permute.xlu0 %336
    %v340 = vadd.f32 %v320, %v335
    %v341 = vadd.f32 %v321, %v337
    %342 = vset.pattern.permute.xlu0 3
    %343 = vperm.xlu0 %342, %v272
    %v344 = vpop.permute.xlu0 %343
    %346 = vset.pattern.permute.xlu0 3
    %347 = vperm.xlu0 %346, %v273
    %v348 = vpop.permute.xlu0 %347
    %v350 = vmul.f32 %v344, %v217
    %v351 = vmul.f32 %v348, %v222
    %354 = vrot.lane.b32.xlu0 %v350, 104
    %v355 = vpop.permute.xlu0 %354
    %356 = vrot.lane.b32.xlu0 %v351, 104
    %v357 = vpop.permute.xlu0 %356
    %v360 = vadd.f32 %v340, %v355
    %v361 = vadd.f32 %v341, %v357
    %v362 = vmul.f32 %v286, %v360
    %v363 = vmul.f32 %v287, %v361
    %366 = vrot.lane.b32.xlu0 %v362, 124
    %v367 = vpop.permute.xlu0 %366
    %368 = vrot.lane.b32.xlu0 %v363, 124
    %v369 = vpop.permute.xlu0 %368
    %370 = vrot.lane.b32.xlu0 %v47, 84
    %v371 = vpop.permute.xlu0 %370
    %373 = vrot.lane.b32.xlu0 %v53, 84
    %v374 = vpop.permute.xlu0 %373
    %v376 = vsel %vm55, %v367, 0
    %v378 = vsel %vm55, %v369, 0
    %380 = vmatprep.subr.mxu0 0.0
    %381 = vmatpush1.msra.mxu0 %v371
    %382 = vmatprep.subr.mxu0 0.0
    %383 = vmatpush1.msra.mxu0 0.0
    %384 = vmatprep.subr.mxu0 0.0
    %385 = vmatpush1.msra.mxu0 0.0
    %386 = vmatprep.subr.mxu0 0.0
    %387 = vmatpush1.msra.mxu0 0.0
    %388 = vmatprep.subr.mxu0 0.0
    %389 = vmatpush1.msra.mxu0 0.0
    %390 = vmatprep.subr.mxu0 0.0
    %391 = vmatpush1.msra.mxu0 0.0
    %392 = vmatprep.subr.mxu0 0.0
    %393 = vmatpush1.msra.mxu0 0.0
    %394 = vmatprep.subr.mxu0 0.0
    %395 = vmatpush1.msra.mxu0 0.0
    %396 = vmatprep.subr.mxu0 0.0
    %397 = vmatpush1.msra.mxu0 0.0
    %398 = vmatprep.subr.mxu0 0.0
    %399 = vmatpush1.msra.mxu0 0.0
    %400 = vmatprep.subr.mxu0 0.0
    %401 = vmatpush1.msra.mxu0 0.0
    %402 = vmatprep.subr.mxu0 0.0
    %403 = vmatpush1.msra.mxu0 0.0
    %404 = vmatprep.subr.mxu0 0.0
    %405 = vmatpush1.msra.mxu0 0.0
    %406 = vmatprep.subr.mxu0 0.0
    %407 = vmatpush1.msra.mxu0 0.0
    %408 = vmatprep.subr.mxu0 0.0
    %409 = vmatpush1.msra.mxu0 0.0
    %410 = vmatprep.subr.mxu0 0.0
    %411 = vmatpush1.msra.mxu0 0.0
    %412 = vmatprep.subr.mxu0 0.0
    %413 = vmatpush1.msra.mxu0 0.0
    %414 = vmatprep.subr.mxu0 0.0
    %415 = vmatpush1.msra.mxu0 0.0
    %416 = vmatprep.subr.mxu0 0.0
    %417 = vmatpush1.msra.mxu0 0.0
    %418 = vmatprep.subr.mxu0 0.0
    %419 = vmatpush1.msra.mxu0 0.0
    %420 = vmatprep.subr.mxu0 0.0
    %421 = vmatpush1.msra.mxu0 0.0
    %422 = vmatprep.subr.mxu0 0.0
    %423 = vmatpush1.msra.mxu0 0.0
    %424 = vmatprep.subr.mxu0 0.0
    %425 = vmatpush1.msra.mxu0 0.0
    %426 = vmatprep.subr.mxu0 0.0
    %427 = vmatpush1.msra.mxu0 0.0
    %428 = vmatprep.subr.mxu0 0.0
    %429 = vmatpush1.msra.mxu0 0.0
    %430 = vmatprep.subr.mxu0 0.0
    %431 = vmatpush1.msra.mxu0 0.0
    %432 = vmatprep.subr.mxu0 0.0
    %433 = vmatpush1.msra.mxu0 0.0
    %434 = vmatprep.subr.mxu0 0.0
    %435 = vmatpush1.msra.mxu0 0.0
    %436 = vmatprep.subr.mxu0 0.0
    %437 = vmatpush1.msra.mxu0 0.0
    %438 = vmatprep.subr.mxu0 0.0
    %439 = vmatpush1.msra.mxu0 0.0
    %440 = vmatprep.subr.mxu0 0.0
    %441 = vmatpush1.msra.mxu0 0.0
    %442 = vmatprep.subr.mxu0 0.0
    %443 = vmatpush1.msra.mxu0 0.0
    %444 = vmatprep.mubr.f32.mxu0 0.0
    %445 = vmatmul.mubr.f32.gmra.mrb[0].mxu0 %v376
    %v446 = vpop.f32.mrb[0].mxu0
    %v447 = vadd.f32 %v374, %v446
    %v448 = vpop.f32.mrb[0].mxu0
    %449 = vmatprep.mubr.f32.mxu0 0.0
    %450 = vmatmul.mubr.f32.gmra.mrb[0].mxu0 %v378
    %v451 = vpop.f32.mrb[0].mxu0
    %v452 = vadd.f32 %v374, %v451
    %v453 = vpop.f32.mrb[0].mxu0
    %454 = vdwg.mxu0
    %v455 = vsel %vm227, %v447, -inf
    %456 = vmax.xlane.f32.xlu0 %v455
    %v457 = vpop.xlane.xlu0 %456
    %v458 = vsel %vm227, %v452, -inf
    %459 = vmax.xlane.f32.xlu0 %v458
    %v460 = vpop.xlane.xlu0 %459
    %vm461 = vcmp.ge.f32.partialorder %v447, %v457
    %vm462 = vcmp.ge.f32.partialorder %v452, %v460
    %v463 = vsel %vm461, %v226, 4
    %v464 = vsel %vm462, %v226, 4
    %v465 = vsel %vm227, %v463, 2147483647
    %v466 = vand.u32 %v465, 65535
    %v467 = vshra.s32 %v465, 16
    %v468 = vcvt.s32.f32 %v466
    %v469 = vcvt.s32.f32 %v467
    %470 = vmin.xlane.f32.xlu0 %v469
    %v471 = vpop.xlane.xlu0 %470
    %vm472 = vcmp.eq.f32.partialorder %v469, %v471
    %v473 = vsel %vm472, %v468, inf
    %474 = vmin.xlane.f32.xlu0 %v473
    %v475 = vpop.xlane.xlu0 %474
    %v476 = vcvt.f32.s32 %v475
    %v477 = vcvt.f32.s32 %v471
    %v478 = vshll.u32 %v477, 16
    %v479 = vadd.s32 %v478, %v476
    %v480 = vsel %vm227, %v464, 2147483647
    %v481 = vand.u32 %v480, 65535
    %v482 = vshra.s32 %v480, 16
    %v483 = vcvt.s32.f32 %v481
    %v484 = vcvt.s32.f32 %v482
    %485 = vmin.xlane.f32.xlu0 %v484
    %v486 = vpop.xlane.xlu0 %485
    %vm487 = vcmp.eq.f32.partialorder %v484, %v486
    %v488 = vsel %vm487, %v483, inf
    %489 = vmin.xlane.f32.xlu0 %v488
    %v490 = vpop.xlane.xlu0 %489
    %v491 = vcvt.f32.s32 %v490
    %v492 = vcvt.f32.s32 %v486
    %v493 = vshll.u32 %v492, 16
    %v494 = vadd.s32 %v493, %v491
    %vm495 = vcmp.eq.s32.totalorder %v226, %v479
    %vm496 = vcmp.eq.s32.totalorder %v226, %v494
    %v497 = vsel %vm495, 1, 0
    %v498 = vsel %vm496, 1, 0
    %v499 = vcvt.s32.f32 %v497
    %v500 = vcvt.s32.f32 %v498
    %v501 = vsub.f32 %v447, %v457
    %v502 = vsub.f32 %v452, %v460
    %v503 = vmul.f32 %v501, 1.442695
    %v504 = vpow.pop %v503
    %v505 = vmul.f32 %v502, 1.442695
    %v506 = vpow.pop %v505
    %v507 = vsel %vm227, %v504, 0.0
    %508 = vadd.xlane.f32.xlu0 %v507
    %v509 = vpop.xlane.xlu0 %508
    %v510 = vsel %vm227, %v506, 0.0
    %511 = vadd.xlane.f32.xlu0 %v510
    %v512 = vpop.xlane.xlu0 %511
    %v513 = vrcp.pop %v509
    %v514 = vrcp.pop %v512
    %516 = vset.pattern.permute.xlu0 0
    %517 = vperm.xlu0 %516, %v499
    %v518 = vpop.permute.xlu0 %517
    %521 = vset.pattern.permute.xlu0 0
    %522 = vperm.xlu0 %521, %v500
    %v523 = vpop.permute.xlu0 %522
    %v525 = vmul.f32 %v518, %v447
    %v526 = vmul.f32 %v523, %v452
    %v527 = vadd.f32 %v525, 0.0
    %v528 = vadd.f32 %v526, 0.0
    %529 = vset.pattern.permute.xlu0 1
    %530 = vperm.xlu0 %529, %v499
    %v531 = vpop.permute.xlu0 %530
    %533 = vset.pattern.permute.xlu0 1
    %534 = vperm.xlu0 %533, %v500
    %v535 = vpop.permute.xlu0 %534
    %v537 = vmul.f32 %v531, %v447
    %v538 = vmul.f32 %v535, %v452
    %541 = vrot.lane.b32.xlu0 %v537, 120
    %v542 = vpop.permute.xlu0 %541
    %543 = vrot.lane.b32.xlu0 %v538, 120
    %v544 = vpop.permute.xlu0 %543
    %v547 = vadd.f32 %v527, %v542
    %v548 = vadd.f32 %v528, %v544
    %549 = vset.pattern.permute.xlu0 2
    %550 = vperm.xlu0 %549, %v499
    %v551 = vpop.permute.xlu0 %550
    %553 = vset.pattern.permute.xlu0 2
    %554 = vperm.xlu0 %553, %v500
    %v555 = vpop.permute.xlu0 %554
    %v557 = vmul.f32 %v551, %v447
    %v558 = vmul.f32 %v555, %v452
    %561 = vrot.lane.b32.xlu0 %v557, 112
    %v562 = vpop.permute.xlu0 %561
    %563 = vrot.lane.b32.xlu0 %v558, 112
    %v564 = vpop.permute.xlu0 %563
    %v567 = vadd.f32 %v547, %v562
    %v568 = vadd.f32 %v548, %v564
    %569 = vset.pattern.permute.xlu0 3
    %570 = vperm.xlu0 %569, %v499
    %v571 = vpop.permute.xlu0 %570
    %573 = vset.pattern.permute.xlu0 3
    %574 = vperm.xlu0 %573, %v500
    %v575 = vpop.permute.xlu0 %574
    %v577 = vmul.f32 %v571, %v447
    %v578 = vmul.f32 %v575, %v452
    %581 = vrot.lane.b32.xlu0 %v577, 104
    %v582 = vpop.permute.xlu0 %581
    %583 = vrot.lane.b32.xlu0 %v578, 104
    %v584 = vpop.permute.xlu0 %583
    %v587 = vadd.f32 %v567, %v582
    %v588 = vadd.f32 %v568, %v584
    %v589 = vmul.f32 %v513, %v587
    %v590 = vmul.f32 %v514, %v588
    %593 = vrot.lane.b32.xlu0 %v589, 124
    %v594 = vpop.permute.xlu0 %593
    %595 = vrot.lane.b32.xlu0 %v590, 124
    %v596 = vpop.permute.xlu0 %595
    %v599 = vadd.f32 %v129, %v594
    %v600 = vadd.f32 %v134, %v596
    %v601 = vsel %vm55, %v599, 0.0
    %v602 = vrot.slane %v601, 4
    %v603 = vadd.f32 %v601, %v602
    %v604 = vrot.slane %v603, 2
    %v605 = vadd.f32 %v603, %v604
    %v606 = vrot.slane %v605, 1
    %v607 = vadd.f32 %v605, %v606
    %v608 = vmul.f32 %v607, 0.125
    %v609 = vsel %vm55, %v608, -inf
    %610 = vmax.xlane.f32.xlu0 %v609
    %v611 = vpop.xlane.xlu0 %610
    %v612 = vsub.f32 %v608, %v611
    %v613 = vmul.f32 %v612, 1.442695
    %v614 = vpow.pop %v613
    %v615 = vsel %vm55, %v614, 0.0
    %616 = vadd.xlane.f32.xlu0 %v615
    %v617 = vpop.xlane.xlu0 %616
    %v618 = vlog2.pop %v617
    %v619 = vmul.f32 %v618, 0.6931472
    %v620 = vadd.f32 %v611, %v619
    %s621 = sld [smem:[#allocation6]]
    %v622 = vstv %s621
    %vm623 = vcmp.eq.s32.totalorder %v226, %v622
    %v624 = vsel %vm623, %v608, 0.0
    %v625 = vsel %vm55, %v624, 0.0
    %626 = vadd.xlane.f32.xlu0 %v625
    %v627 = vpop.xlane.xlu0 %626
    %v628 = vsub.f32 %v620, %v627
    %v629 = vadd.f32 %v628, 0.0
    %v630 = vsel %vm55, %v600, 0.0
    %v631 = vrot.slane %v630, 4
    %v632 = vadd.f32 %v630, %v631
    %v633 = vrot.slane %v632, 2
    %v634 = vadd.f32 %v632, %v633
    %v635 = vrot.slane %v634, 1
    %v636 = vadd.f32 %v634, %v635
    %v637 = vmul.f32 %v636, 0.125
    %v638 = vsel %vm55, %v637, -inf
    %639 = vmax.xlane.f32.xlu0 %v638
    %v640 = vpop.xlane.xlu0 %639
    %v641 = vsub.f32 %v637, %v640
    %v642 = vmul.f32 %v641, 1.442695
    %v643 = vpow.pop %v642
    %v644 = vsel %vm55, %v643, 0.0
    %645 = vadd.xlane.f32.xlu0 %v644
    %v646 = vpop.xlane.xlu0 %645
    %v647 = vlog2.pop %v646
    %v648 = vmul.f32 %v647, 0.6931472
    %v649 = vadd.f32 %v640, %v648
    %s650 = sld [smem:[#allocation6 + $0x1]]
    %v651 = vstv %s650
    %vm652 = vcmp.eq.s32.totalorder %v226, %v651
    %v653 = vsel %vm652, %v637, 0.0
    %v654 = vsel %vm55, %v653, 0.0
    %655 = vadd.xlane.f32.xlu0 %v654
    %v656 = vpop.xlane.xlu0 %655
    %v657 = vsub.f32 %v649, %v656
    %v658 = vadd.f32 %v629, %v657
    %v659 = vmul.f32 %v658, 0.5
    %vm660 = vcmask 0
    %661 = vst.msk [vmem:[#allocation7] sm:$0x1] %vm660, %v659
    // Predicated region
    $region26: #{moe_model_loss.1} parent=1 // pred_check
      _
    $region27: #{moe_model_loss.1} parent=1 // pred_check_branch
      %663 = sbr.rel (0) target = $region29
    $region28: #{moe_model_loss.1} parent=1 // pred_region
      %s665 = ssub.s32 16, 16
      %666 = vsyncadd [#allocation4], %s665
      %s668 = sshll.u32 [#allocation7], 4
      %s669 = int_to_ptr.vmem [resolvable:$true] %s668
      %671 = dma.vmem_to_hbm [thread:$0]  %s669, 16, %s4, [#allocation4]
    $region29: #{moe_model_loss.1} parent=1 // pred_fallthru
      _
    // Predicated region
    $region30: #{moe_model_loss.1} parent=1 // pred_check
      _
    $region31: #{moe_model_loss.1} parent=1 // pred_check_branch
      %673 = sbr.rel (0) target = $region33
    $region32: #{moe_model_loss.1} parent=1 // pred_region
      %674 = dma.done [#allocation4], 16
    $region33: #{moe_model_loss.1} parent=1 // pred_fallthru
      _
    %675 = vsyncpa [#allocation3], 1
    %676 = vsyncpa [#allocation4], 1
    %677 = vsyncpa [#allocation5], 1

</llo_original>
